<compile_context>
chip_gen: v6e
topology: v6e:2x2x1
jax: 0.10.0
libtpu: 0.0.40
codegen_flags: <defaults>
</compile_context>

<pallas_src>
import functools

import jax
import jax.numpy as jnp
from jax import lax
from jax.experimental import pallas as pl
from jax.experimental.pallas import tpu as pltpu


def _round_up(n, m):
    return (n + m - 1) // m * m


def _mlp_kernel(x_ref, w1_ref, b1_ref, w2_ref, o_ref):
    # Layer 1 on the MXU, contracting on x's minor (feature) dim so the result keeps
    # batch on LANES: (Hk, D) . (TB, D)^T -> (Hk, TB).  No explicit transpose of x.
    hT = lax.dot_general(
        w1_ref[...], x_ref[...],
        dimension_numbers=(((1,), (1,)), ((), ())),
        preferred_element_type=jnp.float32,
    )
    # Bias + ReLU on the VPU; b1 is a resident (Hk, 1) column broadcast over lanes.
    hT = jnp.maximum(hT + b1_ref[...], 0.0)
    # Layer 2 (8 -> 1): VPU multiply + cross-sublane (XLU) reduce.  b2 is folded into
    # the constant "bias" hidden unit's weight.  Result is a lane-dense (1, TB) row.
    z = jnp.sum(hT * w2_ref[...], axis=0, keepdims=True)
    # Sigmoid: exp on the EUP + approximate reciprocal on the EUP (off the VALU slots).
    o_ref[...] = pl.reciprocal(1.0 + jnp.exp(-z), approx=True)


@functools.partial(jax.jit, static_argnames=("block_b",))
def cancer_classifier_forward(x, w1, b1, w2, b2, *, block_b=8192):
    """x: (B, D) f32; w1: (D, 8); b1: (1, 8); w2: (8, 1); b2: (1, 1) -> (B, 1) f32."""
    B, D = x.shape
    H = w1.shape[1]
    Hk = _round_up(H + 1, 8)          # 8 hidden units + 1 bias unit -> 16 sublanes

    # --- batch tile selection ------------------------------------------------------
    # Keep each x tile <= ~4 MiB of (lane-padded) VMEM so the full footprint
    # (2 x-buffers + 2 out-buffers + resident weights) stays well under the 16 MiB
    # scoped-VMEM default on every generation (v5e 16 / v6e 32 / v7x 32 MiB scoped).
    padded_row_bytes = _round_up(max(D, 1), 128) * 4
    max_rows = max(128, ((4 << 20) // padded_row_bytes) // 128 * 128)
    tb_cap = max(128, min(_round_up(block_b, 128), max_rows))
    if B <= tb_cap:
        TB, Bp = B, B                  # single full-extent tile, no padding at all
    else:
        TB = tb_cap
        Bp = _round_up(B, TB)
    num_tiles = Bp // TB

    # x is streamed from HBM in its natural (B, D) f32 layout; only pad a ragged tail.
    x_in = x if Bp == B else jnp.pad(x, ((0, Bp - B), (0, 0)))

    # Resident weights (tiny).  W1 in (out, in) layout with a zero "bias unit" row;
    # b1/w2 as f32 columns; b2 folded into the bias unit's layer-2 weight.
    w1t = jnp.zeros((Hk, D), jnp.float32).at[:H, :].set(w1.T.astype(jnp.float32))
    b1t = (jnp.zeros((Hk, 1), jnp.float32)
           .at[:H, 0].set(b1.reshape(H).astype(jnp.float32))
           .at[H, 0].set(1.0))                                # bias unit: relu(0 + 1) == 1
    w2t = (jnp.zeros((Hk, 1), jnp.float32)
           .at[:H, 0].set(w2.reshape(H).astype(jnp.float32))
           .at[H, 0].set(b2[0, 0].astype(jnp.float32)))       # folds b2 in

    out = pl.pallas_call(
        _mlp_kernel,
        out_shape=jax.ShapeDtypeStruct((1, Bp), jnp.float32),
        grid=(num_tiles,),
        in_specs=[
            pl.BlockSpec((TB, D), lambda i: (i, 0)),   # x: streamed, double-buffered
            pl.BlockSpec((Hk, D), lambda i: (0, 0)),   # W1:            VMEM-resident
            pl.BlockSpec((Hk, 1), lambda i: (0, 0)),   # b1 column:     VMEM-resident
            pl.BlockSpec((Hk, 1), lambda i: (0, 0)),   # w2 (+b2) col:  VMEM-resident
        ],
        out_specs=pl.BlockSpec((1, TB), lambda i: (0, i)),    # lane-dense output slab
        compiler_params=pltpu.CompilerParams(
            dimension_semantics=("parallel",),                # shard batch tiles across TCs
        ),
    )(x_in, w1t, b1t, w2t)

    return out[0, :B].reshape(B, 1)


def init_params(key, input_size, hidden=8):
    # Deterministic init mimicking PyTorch's default Linear init:
    # U(-1/sqrt(fan_in), 1/sqrt(fan_in)) for both weights and biases.
    k1, k2, k3, k4 = jax.random.split(key, 4)
    bound1 = 1.0 / jnp.sqrt(input_size)
    bound2 = 1.0 / jnp.sqrt(hidden)
    w1 = jax.random.uniform(k1, (input_size, hidden), jnp.float32, -bound1, bound1)
    b1 = jax.random.uniform(k2, (1, hidden), jnp.float32, -bound1, bound1)
    w2 = jax.random.uniform(k3, (hidden, 1), jnp.float32, -bound2, bound2)
    b2 = jax.random.uniform(k4, (1, 1), jnp.float32, -bound2, bound2)
    return w1, b1, w2, b2


def reference_forward(x, w1, b1, w2, b2):
    h = jnp.maximum(x @ w1 + b1, 0.0)
    return jax.nn.sigmoid(h @ w2 + b2)


if __name__ == "__main__":
    key = jax.random.PRNGKey(0)
    kx, kp = jax.random.split(key)

    input_size = 32
    w1, b1, w2, b2 = init_params(kp, input_size)

    # Small batch: single full-extent tile.
    x_small = jax.random.normal(kx, (8, input_size), dtype=jnp.float32)
    out_small = jax.block_until_ready(cancer_classifier_forward(x_small, w1, b1, w2, b2))
    ref_small = reference_forward(x_small, w1, b1, w2, b2)
    assert out_small.shape == (8, 1)
    assert jnp.allclose(out_small, ref_small, atol=1e-2), "small-batch mismatch vs JAX reference"

    # Larger batch with a small block_b: exercises the multi-tile pipelined grid and
    # the ragged-tail batch padding/slicing path.
    x_big = jax.random.normal(kx, (1000, input_size), dtype=jnp.float32)
    out_big = jax.block_until_ready(
        cancer_classifier_forward(x_big, w1, b1, w2, b2, block_b=256))
    ref_big = reference_forward(x_big, w1, b1, w2, b2)
    assert out_big.shape == (1000, 1)
    assert jnp.allclose(out_big, ref_big, atol=1e-2), "large-batch mismatch vs JAX reference"

    print("KERNEL_OK")
</pallas_src>

<mosaic_0001>
module attributes {stable_mosaic.version = 11 : i64} {
  func.func @_mlp_kernel(%arg0: i32, %arg1: memref<8x32xf32, #tpu.memory_space<vmem>>, %arg2: memref<16x32xf32, #tpu.memory_space<vmem>>, %arg3: memref<16x1xf32, #tpu.memory_space<vmem>>, %arg4: memref<16x1xf32, #tpu.memory_space<vmem>>, %arg5: memref<1x8xf32, #tpu.memory_space<vmem>>) attributes {dimension_semantics = [#tpu.dimension_semantics<parallel>], iteration_bounds = array<i64: 1>, scalar_prefetch = 0 : i64, scratch_operands = 0 : i64, tpu.core_type = #tpu.core_type<tc>, window_params = [{transform_indices = @transform_0, window_bounds = array<i64: 8, 32>}, {pipeline_mode = #tpu.pipeline_mode<synchronous>, transform_indices = @transform_1, window_bounds = array<i64: 16, 32>}, {pipeline_mode = #tpu.pipeline_mode<synchronous>, transform_indices = @transform_2, window_bounds = array<i64: 16, 1>}, {pipeline_mode = #tpu.pipeline_mode<synchronous>, transform_indices = @transform_3, window_bounds = array<i64: 16, 1>}, {transform_indices = @transform_4, window_bounds = array<i64: 1, 8>}]} {
    %c0 = arith.constant 0 : index
    %c0_0 = arith.constant 0 : index
    %0 = vector.load %arg2[%c0, %c0_0] : memref<16x32xf32, #tpu.memory_space<vmem>>, vector<16x32xf32>
    %c0_1 = arith.constant 0 : index
    %c0_2 = arith.constant 0 : index
    %1 = vector.load %arg1[%c0_1, %c0_2] : memref<8x32xf32, #tpu.memory_space<vmem>>, vector<8x32xf32>
    %cst = arith.constant dense<0.000000e+00> : vector<16x8xf32>
    %2 = tpu.matmul %0, %1, %cst {dimension_numbers = #tpu.dot_dimension_numbers<[1], [1], [0], [0], [0, 0, 1, 0], [], []>} : vector<16x32xf32>, vector<8x32xf32>, vector<16x8xf32> -> vector<16x8xf32>
    %c0_3 = arith.constant 0 : index
    %c0_4 = arith.constant 0 : index
    %3 = vector.load %arg3[%c0_3, %c0_4] : memref<16x1xf32, #tpu.memory_space<vmem>>, vector<16x1xf32>
    %4 = vector.broadcast %3 : vector<16x1xf32> to vector<16x8xf32>
    %5 = arith.addf %2, %4 : vector<16x8xf32>
    %cst_5 = arith.constant 0.000000e+00 : f32
    %6 = vector.broadcast %cst_5 : f32 to vector<16x8xf32>
    %7 = arith.maximumf %5, %6 : vector<16x8xf32>
    %c0_6 = arith.constant 0 : index
    %c0_7 = arith.constant 0 : index
    %8 = vector.load %arg4[%c0_6, %c0_7] : memref<16x1xf32, #tpu.memory_space<vmem>>, vector<16x1xf32>
    %9 = vector.broadcast %8 : vector<16x1xf32> to vector<16x8xf32>
    %10 = arith.mulf %7, %9 : vector<16x8xf32>
    %cst_8 = arith.constant dense<0.000000e+00> : vector<8xf32>
    %11 = vector.multi_reduction <add>, %10, %cst_8 [0] : vector<16x8xf32> to vector<8xf32>
    %12 = vector.shape_cast %11 : vector<8xf32> to vector<1x8xf32>
    %cst_9 = arith.constant 0.000000e+00 : f32
    %13 = vector.broadcast %cst_9 : f32 to vector<1x8xf32>
    %14 = arith.subf %13, %12 : vector<1x8xf32>
    %15 = math.exp %14 : vector<1x8xf32>
    %cst_10 = arith.constant 1.000000e+00 : f32
    %16 = vector.broadcast %cst_10 : f32 to vector<1x8xf32>
    %17 = arith.addf %16, %15 : vector<1x8xf32>
    %18 = tpu.reciprocal %17 {approx = true} : vector<1x8xf32> -> vector<1x8xf32>
    %c0_11 = arith.constant 0 : index
    %c0_12 = arith.constant 0 : index
    %19 = vector.load %arg5[%c0_11, %c0_12] : memref<1x8xf32, #tpu.memory_space<vmem>>, vector<1x8xf32>
    tpu.vector_store %arg5[%c0_11, %c0_12], %18 {strides = array<i32>} : memref<1x8xf32, #tpu.memory_space<vmem>>, vector<1x8xf32>,
    return
  }
  func.func @transform_0(%arg0: i32) -> (i32, i32) {
    %c0_i32 = arith.constant 0 : i32
    %c0_i32_0 = arith.constant 0 : i32
    return %arg0, %c0_i32 : i32, i32
  }
  func.func @transform_1(%arg0: i32) -> (i32, i32) {
    %c0_i32 = arith.constant 0 : i32
    %c0_i32_0 = arith.constant 0 : i32
    %c0_i32_1 = arith.constant 0 : i32
    return %c0_i32, %c0_i32_0 : i32, i32
  }
  func.func @transform_2(%arg0: i32) -> (i32, i32) {
    %c0_i32 = arith.constant 0 : i32
    %c0_i32_0 = arith.constant 0 : i32
    %c0_i32_1 = arith.constant 0 : i32
    return %c0_i32, %c0_i32_0 : i32, i32
  }
  func.func @transform_3(%arg0: i32) -> (i32, i32) {
    %c0_i32 = arith.constant 0 : i32
    %c0_i32_0 = arith.constant 0 : i32
    %c0_i32_1 = arith.constant 0 : i32
    return %c0_i32, %c0_i32_0 : i32, i32
  }
  func.func @transform_4(%arg0: i32) -> (i32, i32) {
    %c0_i32 = arith.constant 0 : i32
    %c0_i32_0 = arith.constant 0 : i32
    return %c0_i32, %arg0 : i32, i32
  }
}

</mosaic_0001>

<llo_original>
// kernel: cancer_classifier_forward.1
$region0: #{cancer_classifier_forward.1}
  #allocation0 [shape = 'u32[]', space=smem, size = 0x4, offset = 0x4, fixed_abs, tag = 'smem constant byte address 0x4 - core index']
  #allocation1 [shape = 'u32[144,128]{1,0:T(1,128)}', space=vmem, size = 0x12000, scoped, tag = 'internal scratch']
  %s0 = inlined_call_operand.vmem [shape: f32[8,32], index: 0, kind: input, shape index: {}]
  %s1 = inlined_call_operand.vmem [shape: f32[16,32], index: 1, kind: input, shape index: {}]
  %s2 = inlined_call_operand.vmem [shape: f32[16,1], index: 2, kind: input, shape index: {}]
  %s3 = inlined_call_operand.vmem [shape: f32[16,1], index: 3, kind: input, shape index: {}]
  %s4 = inlined_call_operand.hbm [shape: f32[1,8], index: 4, kind: output, shape index: {}]
  %s5 = sld [smem:[#allocation0]]
  $region26: #{cancer_classifier_forward.1} parent=0
    _
  %s7 = ssub.s32 1, %s5
  %s8 = scalar_select 0, %s7, %s5
  $region1: #{cancer_classifier_forward.1} parent=0
    #allocation2 [shape = 'u8[512]{0}', space=vmem, size = 0x400, scoped, tag = 'output window, operand 0, single buffered']
    #allocation3 [shape = 's32[1]{0}', space=sflag, size = 0x4, scoped, tag = 'scoped memory for cancer_classifier_forward.1']
    %9 = vsyncpa [#allocation3], 0
    // Predicated region
    $region2: #{cancer_classifier_forward.1} parent=1 // pred_check
      _
    $region3: #{cancer_classifier_forward.1} parent=1 // pred_check_branch
      %11 = sbr.rel (0) target = $region5
    $region4: #{cancer_classifier_forward.1} parent=1 // pred_region
      _
    $region5: #{cancer_classifier_forward.1} parent=1 // pred_fallthru
      _
    // Predicated region
    $region6: #{cancer_classifier_forward.1} parent=1 // pred_check
      _
    $region7: #{cancer_classifier_forward.1} parent=1 // pred_check_branch
      %13 = sbr.rel (0) target = $region9
    $region8: #{cancer_classifier_forward.1} parent=1 // pred_region
      _
    $region9: #{cancer_classifier_forward.1} parent=1 // pred_fallthru
      _
    // Predicated region
    $region10: #{cancer_classifier_forward.1} parent=1 // pred_check
      _
    $region11: #{cancer_classifier_forward.1} parent=1 // pred_check_branch
      %15 = sbr.rel (0) target = $region13
    $region12: #{cancer_classifier_forward.1} parent=1 // pred_region
      _
    $region13: #{cancer_classifier_forward.1} parent=1 // pred_fallthru
      _
    // Predicated region
    $region14: #{cancer_classifier_forward.1} parent=1 // pred_check
      _
    $region15: #{cancer_classifier_forward.1} parent=1 // pred_check_branch
      %17 = sbr.rel (0) target = $region17
    $region16: #{cancer_classifier_forward.1} parent=1 // pred_region
      _
    $region17: #{cancer_classifier_forward.1} parent=1 // pred_fallthru
      _
    %v18 = vld [vmem:[%s1] sm:$0xff]
    %v19 = vld [vmem:[%s1 + $0x8] sm:$0xff]
    %v20 = vld [vmem:[%s0] sm:$0xff]
    %v21 = vld [vmem:[%s2] sm:$0xff]
    %v22 = vld [vmem:[%s2 + $0x8] sm:$0xff]
    %24 = vset.pattern.permute.xlu0 0
    %25 = vperm.xlu0 %24, %v21
    %v26 = vpop.permute.xlu0 %25
    %29 = vset.pattern.permute.xlu0 0
    %30 = vperm.xlu0 %29, %v22
    %v31 = vpop.permute.xlu0 %30
    %vm33 = vcmask 261120
    %v35 = vsel %vm33, %v18, 0
    %v38 = vsel %vm33, %v19, 0
    %v41 = vsel %vm33, %v20, 0
    %43 = vmatprep.subr.mxu0 0.0
    %44 = vmatpush1.xpose.msra.mxu0 0.0
    %45 = vmatprep.subr.mxu0 0.0
    %46 = vmatpush1.xpose.msra.mxu0 0.0
    %47 = vmatprep.subr.mxu0 0.0
    %48 = vmatpush1.xpose.msra.mxu0 0.0
    %49 = vmatprep.subr.mxu0 0.0
    %50 = vmatpush1.xpose.msra.mxu0 0.0
    %51 = vmatprep.subr.mxu0 0.0
    %52 = vmatpush1.xpose.msra.mxu0 0.0
    %53 = vmatprep.subr.mxu0 0.0
    %54 = vmatpush1.xpose.msra.mxu0 0.0
    %55 = vmatprep.subr.mxu0 0.0
    %56 = vmatpush1.xpose.msra.mxu0 0.0
    %57 = vmatprep.subr.mxu0 0.0
    %58 = vmatpush1.xpose.msra.mxu0 0.0
    %59 = vmatprep.subr.mxu0 0.0
    %60 = vmatpush1.xpose.msra.mxu0 0.0
    %61 = vmatprep.subr.mxu0 0.0
    %62 = vmatpush1.xpose.msra.mxu0 0.0
    %63 = vmatprep.subr.mxu0 0.0
    %64 = vmatpush1.xpose.msra.mxu0 0.0
    %65 = vmatprep.subr.mxu0 0.0
    %66 = vmatpush1.xpose.msra.mxu0 0.0
    %67 = vmatprep.subr.mxu0 0.0
    %68 = vmatpush1.xpose.msra.mxu0 0.0
    %69 = vmatprep.subr.mxu0 0.0
    %70 = vmatpush1.xpose.msra.mxu0 0.0
    %71 = vmatprep.subr.mxu0 0.0
    %72 = vmatpush1.xpose.msra.mxu0 0.0
    %73 = vmatprep.subr.mxu0 0.0
    %74 = vmatpush1.xpose.msra.mxu0 %v41
    %75 = vmatprep.subr.mxu0 0.0
    %76 = vmatpush2.xpose.msra.mxu0 0.0
    %77 = vmatprep.subr.mxu0 0.0
    %78 = vmatpush2.xpose.msra.mxu0 0.0
    %79 = vmatprep.subr.mxu0 0.0
    %80 = vmatpush2.xpose.msra.mxu0 0.0
    %81 = vmatprep.subr.mxu0 0.0
    %82 = vmatpush2.xpose.msra.mxu0 0.0
    %83 = vmatprep.subr.mxu0 0.0
    %84 = vmatpush2.xpose.msra.mxu0 0.0
    %85 = vmatprep.subr.mxu0 0.0
    %86 = vmatpush2.xpose.msra.mxu0 0.0
    %87 = vmatprep.subr.mxu0 0.0
    %88 = vmatpush2.xpose.msra.mxu0 0.0
    %89 = vmatprep.subr.mxu0 0.0
    %90 = vmatpush2.xpose.msra.mxu0 0.0
    %91 = vmatprep.subr.mxu0 0.0
    %92 = vmatpush2.xpose.msra.mxu0 0.0
    %93 = vmatprep.subr.mxu0 0.0
    %94 = vmatpush2.xpose.msra.mxu0 0.0
    %95 = vmatprep.subr.mxu0 0.0
    %96 = vmatpush2.xpose.msra.mxu0 0.0
    %97 = vmatprep.subr.mxu0 0.0
    %98 = vmatpush2.xpose.msra.mxu0 0.0
    %99 = vmatprep.subr.mxu0 0.0
    %100 = vmatpush2.xpose.msra.mxu0 0.0
    %101 = vmatprep.subr.mxu0 0.0
    %102 = vmatpush2.xpose.msra.mxu0 0.0
    %103 = vmatprep.subr.mxu0 0.0
    %104 = vmatpush2.xpose.msra.mxu0 0.0
    %105 = vmatprep.subr.mxu0 0.0
    %106 = vmatpush2.xpose.msra.mxu0 0.0
    %107 = vmatprep.mubr.f32.mxu0 0.0
    %108 = vmatmul.mubr.f32.gmra.mxu0 %v35
    %v109 = vpop.f32.mrf.mxu0
    %v110 = vadd.f32 %v26, %v109
    %v111 = vpop.f32.mrf.mxu0
    %112 = vmatprep.mubr.f32.mxu0 0.0
    %113 = vmatmul.mubr.f32.gmra.mxu0 %v38
    %v114 = vpop.f32.mrf.mxu0
    %v115 = vadd.f32 %v31, %v114
    %v116 = vpop.f32.mrf.mxu0
    %117 = vdwg.mxu0
    %v118 = vmax.f32 %v110, 0.0
    %v119 = vmax.f32 %v115, 0.0
    %v120 = vld [vmem:[%s3] sm:$0xff]
    %v121 = vld [vmem:[%s3 + $0x8] sm:$0xff]
    %123 = vset.pattern.permute.xlu0 0
    %124 = vperm.xlu0 %123, %v120
    %v125 = vpop.permute.xlu0 %124
    %128 = vset.pattern.permute.xlu0 0
    %129 = vperm.xlu0 %128, %v121
    %v130 = vpop.permute.xlu0 %129
    %v132 = vmul.f32 %v118, %v125
    %v133 = vmul.f32 %v119, %v130
    %vm134 = vcmask 64512
    %v135 = vsel %vm134, %v132, 0.0
    %v136 = vsel %vm134, %v133, 0.0
    %v137 = vadd.f32 %v135, %v136
    %v138 = vrot.slane %v137, 4
    %v139 = vadd.f32 %v137, %v138
    %v140 = vrot.slane %v139, 2
    %v141 = vadd.f32 %v139, %v140
    %v142 = vrot.slane %v141, 1
    %v143 = vadd.f32 %v141, %v142
    %v144 = vsub.f32 0.0, %v143
    %v145 = vmul.f32 %v144, 1.442695
    %v146 = vpow.pop %v145
    %v147 = vadd.f32 %v146, 1.0
    %v148 = vrcp.pop %v147
    %vm149 = vcmask 57344
    %150 = vst.msk [vmem:[#allocation2] sm:$0x1] %vm149, %v148
    // Predicated region
    $region18: #{cancer_classifier_forward.1} parent=1 // pred_check
      _
    $region19: #{cancer_classifier_forward.1} parent=1 // pred_check_branch
      %152 = sbr.rel (0) target = $region21
    $region20: #{cancer_classifier_forward.1} parent=1 // pred_region
      %s154 = ssub.s32 16, 16
      %155 = vsyncadd [#allocation3], %s154
      %s157 = sshll.u32 [#allocation2], 4
      %s158 = int_to_ptr.vmem [resolvable:$true] %s157
      %160 = dma.vmem_to_hbm [thread:$0]  %s158, 16, %s4, [#allocation3]
    $region21: #{cancer_classifier_forward.1} parent=1 // pred_fallthru
      _
    // Predicated region
    $region22: #{cancer_classifier_forward.1} parent=1 // pred_check
      _
    $region23: #{cancer_classifier_forward.1} parent=1 // pred_check_branch
      %162 = sbr.rel (0) target = $region25
    $region24: #{cancer_classifier_forward.1} parent=1 // pred_region
      %163 = dma.done [#allocation3], 16
    $region25: #{cancer_classifier_forward.1} parent=1 // pred_fallthru
      _
    %164 = vsyncpa [#allocation3], 1

</llo_original>
